<compile_context>
chip_gen: v7x
topology: tpu7x:2x2x1
jax: 0.10.0
libtpu: 0.0.40
codegen_flags: <defaults>
</compile_context>

<pallas_src>
import functools

import jax
import jax.numpy as jnp
from jax.experimental import pallas as pl
from jax.experimental.pallas import tpu as pltpu


# ---------------------------------------------------------------------------
# Kernels
# ---------------------------------------------------------------------------

def _lane_partial_sums(x32, *, spatial, t_hw, ti):
    """(nb, c, t_hw) f32 tile -> (c, 128) lane-wise partial channel sums.

    Only cross-vreg VPU adds (batch fold + 128-lane-aligned column groups);
    the final cross-lane reduce happens in the wrapper.  The last spatial
    tile is masked when t_hw does not divide the flattened spatial size.
    """
    nb, c, _ = x32.shape
    xs = x32[0] if nb == 1 else jnp.sum(x32, axis=0)            # (c, t_hw)
    if spatial % t_hw != 0:
        lane = jax.lax.broadcasted_iota(jnp.int32, (c, t_hw), 1)
        rem = spatial - ti * t_hw                               # valid lanes
        xs = jnp.where(lane < rem, xs, 0.0)
    acc = xs[:, 0:128]
    for g in range(1, t_hw // 128):                             # <= 127 adds
        acc = acc + xs[:, g * 128:(g + 1) * 128]
    return acc


def _fused_kernel(shift_ref, x_ref, y_ref, part_ref, *, spatial, t_hw):
    """bn_lag == 0: stream y = x - shift and emit per-block channel sums."""
    ti = pl.program_id(1)
    x = x_ref[...]                                              # (nb, c, t_hw)
    # y stays in the input dtype (native bf16 VPU path on v6e/v7x); shift is
    # pre-cast in the wrapper.
    y_ref[...] = x - shift_ref[...]
    part_ref[...] = _lane_partial_sums(x.astype(jnp.float32),
                                       spatial=spatial, t_hw=t_hw, ti=ti)


def _sum_kernel(x_ref, part_ref, *, spatial, t_hw):
    """Reduction-only pass (bn_lag > 0, pass 1)."""
    ti = pl.program_id(1)
    part_ref[...] = _lane_partial_sums(x_ref[...].astype(jnp.float32),
                                       spatial=spatial, t_hw=t_hw, ti=ti)


def _shift_kernel(shift_ref, x_ref, y_ref):
    """Streaming pass (bn_lag > 0, pass 2): y = x - shift."""
    y_ref[...] = x_ref[...] - shift_ref[...]


# ---------------------------------------------------------------------------
# Tiling / VMEM helpers
# ---------------------------------------------------------------------------

def _vmem_limit_bytes():
    """Scoped-VMEM limit gated by generation (v5e/v6e: 128 MiB phys, v7x: 64)."""
    try:
        phys = int(pltpu.get_tpu_info().vmem_capacity_bytes)
    except Exception:
        return 32 * 1024 * 1024                      # safe default everywhere
    if phys >= 128 * 1024 * 1024:
        return 96 * 1024 * 1024                      # v5e / v6e
    return max(32 * 1024 * 1024, min(48 * 1024 * 1024, (phys * 3) // 4))


def _largest_divisor_leq(n, cap):
    for d in range(max(1, min(n, cap)), 0, -1):
        if n % d == 0:
            return d
    return 1


def _pick_tiles(n, c, spatial, itemsize, *, n_streams):
    """Pick (nb, t_hw) for (nb, c, t_hw) blocks: dtype-aware, ~4-8 MiB/block.

    n_streams = number of block-sized arrays streamed per grid step (x alone
    for the sum pass, x + y for the fused / stream passes); double-buffered
    totals stay well inside v7x's VMEM while exceeding the ~2 MiB target.
    """
    block_bytes = (8 if n_streams == 1 else 4) * 1024 * 1024
    max_elems = max(128 * c, block_bytes // itemsize)
    spatial_padded = -(-spatial // 128) * 128
    t_hw = min(spatial_padded,
               max(128, min(16384, (max_elems // c) // 128 * 128)))
    nb = _largest_divisor_leq(n, max(1, max_elems // (c * t_hw)))
    return nb, t_hw


# ---------------------------------------------------------------------------
# pallas_call builders
# ---------------------------------------------------------------------------

def _fused_call(x3, shift, vmem_limit):
    n, c, spatial = x3.shape
    nb, t_hw = _pick_tiles(n, c, spatial, x3.dtype.itemsize, n_streams=2)
    num_nb, num_t = n // nb, pl.cdiv(spatial, t_hw)
    # TODO(synk): sweep pipeline_mode=pl.Buffered(3) on the x spec for tiny
    # C/spatial problems where per-step compute is only a few hundred cycles.
    grid_spec = pltpu.PrefetchScalarGridSpec(
        num_scalar_prefetch=0,
        grid=(num_nb, num_t),
        in_specs=[
            pl.BlockSpec((c, 1), lambda ni, ti: (0, 0)),              # shift
            pl.BlockSpec((nb, c, t_hw), lambda ni, ti: (ni, 0, ti)),  # x tile
        ],
        out_specs=[
            pl.BlockSpec((nb, c, t_hw), lambda ni, ti: (ni, 0, ti)),  # y tile
            pl.BlockSpec((None, None, c, 128),
                         lambda ni, ti: (ni, ti, 0, 0)),              # partials
        ],
    )
    return pl.pallas_call(
        functools.partial(_fused_kernel, spatial=spatial, t_hw=t_hw),
        out_shape=(jax.ShapeDtypeStruct((n, c, spatial), x3.dtype),
                   jax.ShapeDtypeStruct((num_nb, num_t, c, 128), jnp.float32)),
        grid_spec=grid_spec,
        compiler_params=pltpu.CompilerParams(
            dimension_semantics=("parallel", "parallel"),
            vmem_limit_bytes=vmem_limit),
    )(shift, x3)


def _sum_call(x3, vmem_limit):
    n, c, spatial = x3.shape
    nb, t_hw = _pick_tiles(n, c, spatial, x3.dtype.itemsize, n_streams=1)
    num_nb, num_t = n // nb, pl.cdiv(spatial, t_hw)
    grid_spec = pltpu.PrefetchScalarGridSpec(
        num_scalar_prefetch=0,
        grid=(num_nb, num_t),
        in_specs=[pl.BlockSpec((nb, c, t_hw), lambda ni, ti: (ni, 0, ti))],
        out_specs=pl.BlockSpec((None, None, c, 128),
                               lambda ni, ti: (ni, ti, 0, 0)),
    )
    return pl.pallas_call(
        functools.partial(_sum_kernel, spatial=spatial, t_hw=t_hw),
        out_shape=jax.ShapeDtypeStruct((num_nb, num_t, c, 128), jnp.float32),
        grid_spec=grid_spec,
        compiler_params=pltpu.CompilerParams(
            dimension_semantics=("parallel", "parallel"),
            vmem_limit_bytes=vmem_limit),
    )(x3)


def _shift_call(x3, shift, vmem_limit):
    n, c, spatial = x3.shape
    nb, t_hw = _pick_tiles(n, c, spatial, x3.dtype.itemsize, n_streams=2)
    num_nb, num_t = n // nb, pl.cdiv(spatial, t_hw)
    grid_spec = pltpu.PrefetchScalarGridSpec(
        num_scalar_prefetch=0,
        grid=(num_nb, num_t),
        in_specs=[
            pl.BlockSpec((c, 1), lambda ni, ti: (0, 0)),              # shift
            pl.BlockSpec((nb, c, t_hw), lambda ni, ti: (ni, 0, ti)),  # x tile
        ],
        out_specs=pl.BlockSpec((nb, c, t_hw), lambda ni, ti: (ni, 0, ti)),
    )
    return pl.pallas_call(
        _shift_kernel,
        out_shape=jax.ShapeDtypeStruct((n, c, spatial), x3.dtype),
        grid_spec=grid_spec,
        compiler_params=pltpu.CompilerParams(
            dimension_semantics=("parallel", "parallel"),
            vmem_limit_bytes=vmem_limit),
    )(shift, x3)


# ---------------------------------------------------------------------------
# Public wrapper (training-mode forward)
# ---------------------------------------------------------------------------

def moving_batch_norm_nd_forward(x, running_mean, bias, step, *,
                                 decay=0.1, bn_lag=0.0, affine=True,
                                 eps=0.0001):
    """Training-mode forward of MovingBatchNormNd.

    x:            (N, C, *spatial) as in PyTorch (channels second)
    running_mean: (C,) buffer
    bias:         (C,) parameter (ignored if affine=False)
    step:         (1,) float32 step-counter buffer
    Returns (y, new_running_mean, new_step).
    """
    del eps  # the reference forward has no variance / eps term
    n, c = int(x.shape[0]), int(x.shape[1])
    spatial = 1
    for d in x.shape[2:]:
        spatial *= int(d)
    m = float(n * spatial)

    x3 = x.reshape(n, c, spatial)                 # free reshape, no transpose
    rm = running_mean.astype(jnp.float32)
    bias_f = (bias.astype(jnp.float32) if affine
              else jnp.zeros((c,), jnp.float32))
    vmem_limit = _vmem_limit_bytes()

    if bn_lag > 0.0:
        # Pass 1: per-block channel sums (x-only tiles use the full budget).
        parts = _sum_call(x3, vmem_limit)
        batch_mean = jnp.sum(parts, axis=(0, 1, 3)) / m
        used_mean = batch_mean - (1.0 - bn_lag) * (batch_mean - rm)
        used_mean = used_mean / (1.0 - jnp.float32(bn_lag) ** (step[0] + 1.0))
        new_rm = rm - decay * (rm - batch_mean)
        shift = (used_mean - bias_f).astype(x.dtype).reshape(c, 1)
        # Pass 2: stream y = x - shift.
        y3 = _shift_call(x3, shift, vmem_limit)
    else:
        # y = x - running_mean + bias does not depend on batch_mean, so one
        # fused pass streams y while emitting the per-block channel sums.
        shift = (rm - bias_f).astype(x.dtype).reshape(c, 1)
        y3, parts = _fused_call(x3, shift, vmem_limit)
        batch_mean = jnp.sum(parts, axis=(0, 1, 3)) / m
        new_rm = rm - decay * (rm - batch_mean)

    return y3.reshape(x.shape), new_rm, step + 1.0


# ---------------------------------------------------------------------------
# Pure-JAX reference + test
# ---------------------------------------------------------------------------

def _reference_forward(x, running_mean, bias, step,
                       *, decay=0.1, bn_lag=0.0, affine=True):
    """Pure-JAX reference mirroring the PyTorch forward (training mode)."""
    c = x.shape[1]
    x_t = jnp.moveaxis(x, 1, 0).reshape(c, -1)
    batch_mean = jnp.mean(x_t, axis=1)
    used_mean = running_mean
    if bn_lag > 0.0:
        used_mean = batch_mean - (1 - bn_lag) * (batch_mean - used_mean)
        used_mean = used_mean / (1.0 - bn_lag ** (step[0] + 1.0))
    new_rm = running_mean - decay * (running_mean - batch_mean)
    pshape = (1, c) + (1,) * (x.ndim - 2)
    y = x - used_mean.reshape(pshape)
    if affine:
        y = y + bias.reshape(pshape)
    return y, new_rm, step + 1.0


if __name__ == "__main__":
    key = jax.random.PRNGKey(0)
    N, C, H, W = 2, 4, 16, 16

    kx, kr, kb = jax.random.split(key, 3)
    x = jax.random.normal(kx, (N, C, H, W), dtype=jnp.float32)
    running_mean = 0.1 * jax.random.normal(kr, (C,), dtype=jnp.float32)
    bias = 0.05 * jax.random.normal(kb, (C,), dtype=jnp.float32)
    step = jnp.zeros((1,), dtype=jnp.float32)

    configs = [
        dict(decay=0.1, bn_lag=0.0, affine=True),    # module defaults
        dict(decay=0.1, bn_lag=0.5, affine=True),    # lag-corrected path
        dict(decay=0.1, bn_lag=0.0, affine=False),   # no-bias path
    ]
    for cfg in configs:
        y, new_rm, new_step = moving_batch_norm_nd_forward(
            x, running_mean, bias, step, **cfg)
        jax.block_until_ready((y, new_rm, new_step))

        y_ref, rm_ref, step_ref = _reference_forward(
            x, running_mean, bias, step, **cfg)

        assert jnp.allclose(y, y_ref, atol=1e-5, rtol=1e-5), cfg
        assert jnp.allclose(new_rm, rm_ref, atol=1e-5, rtol=1e-5), cfg
        assert jnp.allclose(new_step, step_ref), cfg

    print("KERNEL_OK")
</pallas_src>

<mosaic_0001>
module attributes {stable_mosaic.version = 11 : i64} {
  func.func @_fused_kernel(%arg0: i32, %arg1: i32, %arg2: memref<4x1xf32, #tpu.memory_space<vmem>>, %arg3: memref<2x4x256xf32, #tpu.memory_space<vmem>>, %arg4: memref<2x4x256xf32, #tpu.memory_space<vmem>>, %arg5: memref<1x1x4x128xf32, #tpu.memory_space<vmem>>) attributes {dimension_semantics = [#tpu.dimension_semantics<parallel>, #tpu.dimension_semantics<parallel>], iteration_bounds = array<i64: 1, 1>, scalar_prefetch = 0 : i64, scratch_operands = 0 : i64, tpu.core_type = #tpu.core_type<tc>, window_params = [{pipeline_mode = #tpu.pipeline_mode<synchronous>, transform_indices = @transform_0, window_bounds = array<i64: 4, 1>}, {transform_indices = @transform_1, window_bounds = array<i64: 2, 4, 256>}, {transform_indices = @transform_2, window_bounds = array<i64: 2, 4, 256>}, {transform_indices = @transform_3, window_bounds = array<i64: 1, 1, 4, 128>}]} {
    %c0 = arith.constant 0 : index
    %c0_0 = arith.constant 0 : index
    %c0_1 = arith.constant 0 : index
    %0 = vector.load %arg3[%c0, %c0_0, %c0_1] : memref<2x4x256xf32, #tpu.memory_space<vmem>>, vector<2x4x256xf32>
    %c0_2 = arith.constant 0 : index
    %c0_3 = arith.constant 0 : index
    %1 = vector.load %arg2[%c0_2, %c0_3] : memref<4x1xf32, #tpu.memory_space<vmem>>, vector<4x1xf32>
    %2 = vector.shape_cast %1 : vector<4x1xf32> to vector<1x4x1xf32>
    %3 = vector.broadcast %2 : vector<1x4x1xf32> to vector<2x4x256xf32>
    %4 = arith.subf %0, %3 : vector<2x4x256xf32>
    %c0_4 = arith.constant 0 : index
    %c0_5 = arith.constant 0 : index
    %c0_6 = arith.constant 0 : index
    %5 = vector.load %arg4[%c0_4, %c0_5, %c0_6] : memref<2x4x256xf32, #tpu.memory_space<vmem>>, vector<2x4x256xf32>
    tpu.vector_store %arg4[%c0_4, %c0_5, %c0_6], %4 {strides = array<i32>} : memref<2x4x256xf32, #tpu.memory_space<vmem>>, vector<2x4x256xf32>,
    %cst = arith.constant dense<0.000000e+00> : vector<4x256xf32>
    %6 = vector.multi_reduction <add>, %0, %cst [0] : vector<2x4x256xf32> to vector<4x256xf32>
    %7 = vector.extract_strided_slice %6 {offsets = [0, 0], sizes = [4, 128], strides = [1, 1]} : vector<4x256xf32> to vector<4x128xf32>
    %8 = vector.extract_strided_slice %6 {offsets = [0, 128], sizes = [4, 128], strides = [1, 1]} : vector<4x256xf32> to vector<4x128xf32>
    %9 = arith.addf %7, %8 : vector<4x128xf32>
    %c0_7 = arith.constant 0 : index
    %c0_8 = arith.constant 0 : index
    %c0_9 = arith.constant 0 : index
    %c0_10 = arith.constant 0 : index
    %10 = vector.load %arg5[%c0_7, %c0_8, %c0_9, %c0_10] : memref<1x1x4x128xf32, #tpu.memory_space<vmem>>, vector<1x1x4x128xf32>
    %11 = vector.shape_cast %10 : vector<1x1x4x128xf32> to vector<4x128xf32>
    %12 = vector.shape_cast %9 : vector<4x128xf32> to vector<1x1x4x128xf32>
    tpu.vector_store %arg5[%c0_7, %c0_8, %c0_9, %c0_10], %12 {strides = array<i32>} : memref<1x1x4x128xf32, #tpu.memory_space<vmem>>, vector<1x1x4x128xf32>,
    return
  }
  func.func @transform_0(%arg0: i32, %arg1: i32) -> (i32, i32) {
    %c0_i32 = arith.constant 0 : i32
    %c0_i32_0 = arith.constant 0 : i32
    %c0_i32_1 = arith.constant 0 : i32
    return %c0_i32, %c0_i32_0 : i32, i32
  }
  func.func @transform_1(%arg0: i32, %arg1: i32) -> (i32, i32, i32) {
    %c0_i32 = arith.constant 0 : i32
    %c0_i32_0 = arith.constant 0 : i32
    return %arg0, %c0_i32, %arg1 : i32, i32, i32
  }
  func.func @transform_2(%arg0: i32, %arg1: i32) -> (i32, i32, i32) {
    %c0_i32 = arith.constant 0 : i32
    %c0_i32_0 = arith.constant 0 : i32
    return %arg0, %c0_i32, %arg1 : i32, i32, i32
  }
  func.func @transform_3(%arg0: i32, %arg1: i32) -> (i32, i32, i32, i32) {
    %c0_i32 = arith.constant 0 : i32
    %c0_i32_0 = arith.constant 0 : i32
    %c0_i32_1 = arith.constant 0 : i32
    return %arg0, %arg1, %c0_i32, %c0_i32_0 : i32, i32, i32, i32
  }
}

</mosaic_0001>

<llo_original>
// kernel: tpu_custom_call.1
$region0: #{tpu_custom_call.1}
  #allocation0 [shape = 'u32[]', space=smem, size = 0x4, offset = 0x4, fixed_abs, tag = 'smem constant byte address 0x4 - core index']
  #allocation1 [shape = 'u32[144,128]{1,0:T(1,128)}', space=vmem, size = 0x12000, scoped, tag = 'internal scratch']
  %s0 = inlined_call_operand.vmem [shape: f32[4,1], index: 0, kind: input, shape index: {}]
  %s1 = inlined_call_operand.hbm [shape: f32[2,4,256], index: 1, kind: input, shape index: {}]
  %s2 = inlined_call_operand.hbm [shape: f32[2,4,256], index: 2, kind: output, shape index: {0}]
  %s3 = inlined_call_operand.hbm [shape: f32[1,1,4,128], index: 3, kind: output, shape index: {1}]
  %4 = xla_tuple %s2, %s3
  %s5 = sld [smem:[#allocation0]]
  $region30: #{tpu_custom_call.1} parent=0
    _
  %s7 = ssub.s32 1, %s5
  %s8 = scalar_select 0, %s7, %s5
  $region1: #{tpu_custom_call.1} parent=0
    #allocation2 [shape = 'u8[8192]{0}', space=vmem, size = 0x2000, scoped, tag = 'input window, operand 1, single buffered']
    #allocation3 [shape = 's32[1]{0}', space=sflag, size = 0x4, scoped, tag = 'scoped memory for tpu_custom_call.1']
    #allocation4 [shape = 's32[1]{0}', space=sflag, size = 0x4, scoped, tag = 'scoped memory for tpu_custom_call.1']
    #allocation5 [shape = 'u8[8192]{0}', space=vmem, size = 0x2000, scoped, tag = 'output window, operand 0, single buffered']
    #allocation6 [shape = 'u8[2048]{0}', space=vmem, size = 0x800, scoped, tag = 'output window, operand 1, single buffered']
    #allocation7 [shape = 's32[1]{0}', space=sflag, size = 0x4, scoped, tag = 'scoped memory for tpu_custom_call.1']
    %9 = vsyncpa [#allocation3], 0
    %10 = vsyncpa [#allocation4], 0
    %11 = vsyncpa [#allocation7], 0
    // Predicated region
    $region2: #{tpu_custom_call.1} parent=1 // pred_check
      _
    $region3: #{tpu_custom_call.1} parent=1 // pred_check_branch
      %13 = sbr.rel (0) target = $region5
    $region4: #{tpu_custom_call.1} parent=1 // pred_region
      _
    $region5: #{tpu_custom_call.1} parent=1 // pred_fallthru
      _
    // Predicated region
    $region6: #{tpu_custom_call.1} parent=1 // pred_check
      _
    $region7: #{tpu_custom_call.1} parent=1 // pred_check_branch
      %15 = sbr.rel (0) target = $region9
    $region8: #{tpu_custom_call.1} parent=1 // pred_region
      %s17 = ssub.s32 256, 256
      %18 = vsyncadd [#allocation3], %s17
      %s19 = sshll.u32 [#allocation2], 4
      %s20 = int_to_ptr.vmem [resolvable:$true] %s19
      %25 = dma.hbm_to_vmem [thread:$0]  %s1, 256, %s20, [#allocation3], 128, 128, 8
    $region9: #{tpu_custom_call.1} parent=1 // pred_fallthru
      _
    // Predicated region
    $region10: #{tpu_custom_call.1} parent=1 // pred_check
      _
    $region11: #{tpu_custom_call.1} parent=1 // pred_check_branch
      %27 = sbr.rel (0) target = $region13
    $region12: #{tpu_custom_call.1} parent=1 // pred_region
      %28 = dma.done [#allocation3], 256
    $region13: #{tpu_custom_call.1} parent=1 // pred_fallthru
      _
    %v29 = vld [vmem:[#allocation2] sm:$0xff]
    %v30 = vld [vmem:[#allocation2 + $0x8] sm:$0xff]
    %v31 = vld [vmem:[%s0] sm:$0xf]
    %33 = vset.pattern.permute.xlu0 0
    %34 = vperm.xlu0 %33, %v31
    %v35 = vpop.permute.xlu0 %34
    %v37 = vunpack.c.l.s4 839922192
    %v38 = vunpack.c.0.s8 %v37
    %v39 = vlaneseq
    %v40 = vshrl.u32 %v39, 7
    %v41 = vsub.s32 %v38, %v40
    %v42 = vrot.slane %v35, %v41
    %v44 = vsub.f32 %v29, %v42
    %v45 = vsub.f32 %v30, %v42
    %46 = vst [vmem:[#allocation5] sm:$0xff] %v44
    %47 = vst [vmem:[#allocation5 + $0x8] sm:$0xff] %v45
    %v50 = vcombine.high %v29, %v29
    %v51 = vcombine.high %v30, %v30
    %vm54 = vcmask 1043456
    %v55 = vsel %vm54, %v29, 0.0
    %v56 = vsel %vm54, %v30, 0.0
    %v57 = vadd.f32 %v55, %v56
    %v58 = vsel %vm54, %v50, 0.0
    %v59 = vsel %vm54, %v51, 0.0
    %v60 = vadd.f32 %v58, %v59
    %v61 = vadd.f32 %v57, %v60
    %62 = vst [vmem:[#allocation6] sm:$0xf] %v61
    // Predicated region
    $region14: #{tpu_custom_call.1} parent=1 // pred_check
      _
    $region15: #{tpu_custom_call.1} parent=1 // pred_check_branch
      %64 = sbr.rel (0) target = $region17
    $region16: #{tpu_custom_call.1} parent=1 // pred_region
      %s66 = ssub.s32 256, 256
      %67 = vsyncadd [#allocation4], %s66
      %s68 = sshll.u32 [#allocation5], 4
      %s69 = int_to_ptr.vmem [resolvable:$true] %s68
      %74 = dma.vmem_to_hbm [thread:$0]  %s69, 256, %s2, [#allocation4], 128, 128, 8
    $region17: #{tpu_custom_call.1} parent=1 // pred_fallthru
      _
    // Predicated region
    $region18: #{tpu_custom_call.1} parent=1 // pred_check
      _
    $region19: #{tpu_custom_call.1} parent=1 // pred_check_branch
      %76 = sbr.rel (0) target = $region21
    $region20: #{tpu_custom_call.1} parent=1 // pred_region
      %s78 = ssub.s32 64, 64
      %79 = vsyncadd [#allocation7], %s78
      %s81 = sshll.u32 [#allocation6], 4
      %s82 = int_to_ptr.vmem [resolvable:$true] %s81
      %84 = dma.vmem_to_hbm [thread:$0]  %s82, 64, %s3, [#allocation7]
    $region21: #{tpu_custom_call.1} parent=1 // pred_fallthru
      _
    // Predicated region
    $region22: #{tpu_custom_call.1} parent=1 // pred_check
      _
    $region23: #{tpu_custom_call.1} parent=1 // pred_check_branch
      %86 = sbr.rel (0) target = $region25
    $region24: #{tpu_custom_call.1} parent=1 // pred_region
      %87 = dma.done [#allocation4], 256
    $region25: #{tpu_custom_call.1} parent=1 // pred_fallthru
      _
    // Predicated region
    $region26: #{tpu_custom_call.1} parent=1 // pred_check
      _
    $region27: #{tpu_custom_call.1} parent=1 // pred_check_branch
      %89 = sbr.rel (0) target = $region29
    $region28: #{tpu_custom_call.1} parent=1 // pred_region
      %90 = dma.done [#allocation7], 64
    $region29: #{tpu_custom_call.1} parent=1 // pred_fallthru
      _
    %91 = vsyncpa [#allocation3], 1
    %92 = vsyncpa [#allocation4], 1
    %93 = vsyncpa [#allocation7], 1

</llo_original>
